<compile_context>
chip_gen: v5e
topology: v5e:2x2
jax: 0.10.0
libtpu: 0.0.40
codegen_flags: <defaults>
</compile_context>

<pallas_src>
import functools

import jax
import jax.numpy as jnp
from jax.experimental import pallas as pl
from jax.experimental.pallas import tpu as pltpu


LANES_CANDIDATES = (512, 256, 128)   # lane-dense widths (multiples of 128)
TARGET_BLOCK_BYTES = 4 * 1024 * 1024 # per-buffer block target (f32 working set)
MIN_BLOCK_ROWS = 256                 # don't split work below ~0.5 MiB blocks


def _cdiv(a, b):
    return -(-a // b)


def _round_up(x, m):
    return ((x + m - 1) // m) * m


def _qfocal_kernel(pred_ref, true_ref, out_ref, *, gamma, alpha):
    x = pred_ref[...].astype(jnp.float32)
    t = true_ref[...].astype(jnp.float32)

    # Single transcendental shared between BCE and sigmoid.
    e = jnp.exp(-jnp.abs(x))                    # exp(-|x|), in (0, 1]

    # Numerically-stable BCE-with-logits (matches torch BCEWithLogitsLoss,
    # reduction='none'):  max(x,0) - x*t + log(1 + exp(-|x|)).
    # 1+e is in (1,2] -> no cancellation, plain log is as accurate as log1p.
    bce = jnp.maximum(x, 0.0) - x * t + jnp.log(1.0 + e)

    # sigmoid(x) from the same exponential, computed exactly:
    #   x >= 0: 1/(1+e)      x < 0: e/(1+e)
    num = jnp.where(x >= 0.0, 1.0, e)
    pred_prob = num / (1.0 + e)

    # alpha factor: t*a + (1-t)*(1-a)  ==  (1-a) + t*(2a-1)   (one FMA)
    alpha_factor = (1.0 - alpha) + t * (2.0 * alpha - 1.0)

    d = jnp.abs(t - pred_prob)
    if gamma == 1.5:
        mf = d * jnp.sqrt(d)                    # d**1.5 without the exp/log pow path
    elif gamma == 2.0:
        mf = d * d
    elif gamma == 1.0:
        mf = d
    elif gamma == 0.5:
        mf = jnp.sqrt(d)
    else:
        mf = d ** gamma                         # generic fallback (gamma > 0)

    out_ref[...] = (bce * alpha_factor * mf).astype(out_ref.dtype)


def qfocal_loss(pred, true, gamma=1.5, alpha=0.25):
    """Elementwise quality focal loss. pred/true: same-shape float arrays (e.g. NCHW)."""
    assert pred.shape == true.shape
    orig_shape = pred.shape
    total = pred.size
    if total == 0:
        return jnp.zeros(orig_shape, pred.dtype)

    itemsize = jnp.dtype(pred.dtype).itemsize
    sub = max(8, 32 // itemsize)     # sublane multiple: 8 f32, 16 bf16, 32 int8

    # Pick a lane width that divides `total` so the reshape to the lane-dense
    # slab is a free bitcast (no pad / copy / output slice on a mem-bound op).
    lanes = None
    for cand in LANES_CANDIDATES:
        if total % cand == 0:
            lanes = cand
            break
    pad = 0
    if lanes is None:
        # Rare fallback: element count not a multiple of 128 -> pad only to the
        # next multiple of 128 (<128 extra elements) and slice the output.
        lanes = 128
        pad = (-total) % lanes

    pred_flat = pred.reshape(-1)
    true_flat = true.reshape(-1)
    if pad:
        pred_flat = jnp.pad(pred_flat, (0, pad))
        true_flat = jnp.pad(true_flat, (0, pad))
    rows = (total + pad) // lanes

    # Block / grid derivation:
    #  * the last (ragged) grid block is masked by Pallas, so `rows` is never
    #    rounded up to a block multiple,
    #  * even grid (>=2 steps) whenever there is enough work -> both v7x TCs fed,
    #  * block rows balanced across the grid so no block is nearly empty,
    #  * blocks capped at ~4 MiB per buffer.
    target_rows = max(MIN_BLOCK_ROWS, TARGET_BLOCK_BYTES // (lanes * 4))
    if rows < 2 * MIN_BLOCK_ROWS:
        tr = rows                               # single block == full array dim
        grid = 1
    else:
        grid = 2 * max(1, _cdiv(rows, 2 * target_rows))   # even, >= 2
        tr = _round_up(_cdiv(rows, grid), sub)            # balanced block rows
        grid = _cdiv(rows, tr)

    kernel = functools.partial(_qfocal_kernel, gamma=float(gamma), alpha=float(alpha))

    out2d = pl.pallas_call(
        kernel,
        out_shape=jax.ShapeDtypeStruct((rows, lanes), pred.dtype),
        grid_spec=pltpu.PrefetchScalarGridSpec(
            num_scalar_prefetch=0,
            grid=(grid,),
            in_specs=[
                pl.BlockSpec((tr, lanes), lambda i: (i, 0)),
                pl.BlockSpec((tr, lanes), lambda i: (i, 0)),
            ],
            out_specs=pl.BlockSpec((tr, lanes), lambda i: (i, 0)),
        ),
        compiler_params=pltpu.CompilerParams(
            dimension_semantics=("parallel",),
            # Worst case: 3 arrays x 2 buffers x ~4 MiB = ~24 MiB. 48 MiB lifts
            # v5e's 16 MiB / v6e's 32 MiB scoped defaults (keeps 2-deep
            # pipelining) while staying well under v7x's 64 MiB physical VMEM.
            vmem_limit_bytes=48 * 1024 * 1024,
        ),
        # Advisory roofline: purely HBM-bandwidth bound (~12 B/elem for f32).
        cost_estimate=pl.CostEstimate(
            flops=12 * total,
            transcendentals=4 * total,
            bytes_accessed=3 * total * itemsize,
        ),
    )(pred_flat.reshape(rows, lanes), true_flat.reshape(rows, lanes))

    out_flat = out2d.reshape(-1)
    if pad:
        out_flat = out_flat[:total]
    return out_flat.reshape(orig_shape)


def _reference(pred, true, gamma=1.5, alpha=0.25):
    x = pred.astype(jnp.float32)
    t = true.astype(jnp.float32)
    bce = jnp.maximum(x, 0.0) - x * t + jnp.log1p(jnp.exp(-jnp.abs(x)))
    p = jax.nn.sigmoid(x)
    af = t * alpha + (1.0 - t) * (1.0 - alpha)
    mf = jnp.abs(t - p) ** gamma
    return bce * af * mf


if __name__ == "__main__":
    key = jax.random.PRNGKey(0)
    k1, k2 = jax.random.split(key)

    # NCHW logits and soft quality targets in [0, 1].
    shape = (2, 4, 16, 16)
    pred = jax.random.normal(k1, shape, dtype=jnp.float32)
    true = jax.random.uniform(k2, shape, dtype=jnp.float32)

    out = qfocal_loss(pred, true, gamma=1.5, alpha=0.25)
    out = jax.block_until_ready(out)

    ref = _reference(pred, true, gamma=1.5, alpha=0.25)
    assert out.shape == shape
    max_err = float(jnp.max(jnp.abs(out - ref)))
    assert jnp.allclose(out, ref, atol=1e-4, rtol=1e-4), (
        "mismatch vs reference, max abs err %.3e" % max_err)

    # TODO(synk): the module's `print('qfl')` debug side-effect has no kernel equivalent.
    print("KERNEL_OK")
</pallas_src>

<mosaic_0001>
module attributes {stable_mosaic.version = 11 : i64} {
  func.func @_qfocal_kernel(%arg0: i32, %arg1: memref<4x512xf32, #tpu.memory_space<vmem>>, %arg2: memref<4x512xf32, #tpu.memory_space<vmem>>, %arg3: memref<4x512xf32, #tpu.memory_space<vmem>>) attributes {dimension_semantics = [#tpu.dimension_semantics<parallel>], iteration_bounds = array<i64: 1>, scalar_prefetch = 0 : i64, scratch_operands = 0 : i64, tpu.core_type = #tpu.core_type<tc>, window_params = [{transform_indices = @transform_0, window_bounds = array<i64: 4, 512>}, {transform_indices = @transform_1, window_bounds = array<i64: 4, 512>}, {transform_indices = @transform_2, window_bounds = array<i64: 4, 512>}]} {
    %c0 = arith.constant 0 : index
    %c0_0 = arith.constant 0 : index
    %0 = vector.load %arg1[%c0, %c0_0] : memref<4x512xf32, #tpu.memory_space<vmem>>, vector<4x512xf32>
    %c0_1 = arith.constant 0 : index
    %c0_2 = arith.constant 0 : index
    %1 = vector.load %arg2[%c0_1, %c0_2] : memref<4x512xf32, #tpu.memory_space<vmem>>, vector<4x512xf32>
    %2 = math.absf %0 : vector<4x512xf32>
    %cst = arith.constant 0.000000e+00 : f32
    %3 = vector.broadcast %cst : f32 to vector<4x512xf32>
    %4 = arith.subf %3, %2 : vector<4x512xf32>
    %5 = math.exp %4 : vector<4x512xf32>
    %cst_3 = arith.constant 0.000000e+00 : f32
    %6 = vector.broadcast %cst_3 : f32 to vector<4x512xf32>
    %7 = arith.maximumf %0, %6 : vector<4x512xf32>
    %8 = arith.mulf %0, %1 : vector<4x512xf32>
    %9 = arith.subf %7, %8 : vector<4x512xf32>
    %cst_4 = arith.constant 1.000000e+00 : f32
    %10 = vector.broadcast %cst_4 : f32 to vector<4x512xf32>
    %11 = arith.addf %10, %5 : vector<4x512xf32>
    %12 = math.log %11 : vector<4x512xf32>
    %13 = arith.addf %9, %12 : vector<4x512xf32>
    %cst_5 = arith.constant 0.000000e+00 : f32
    %14 = vector.broadcast %cst_5 : f32 to vector<4x512xf32>
    %15 = arith.cmpf oge, %0, %14 : vector<4x512xf32>
    %cst_6 = arith.constant 1.000000e+00 : f32
    %16 = vector.broadcast %cst_6 : f32 to vector<4x512xf32>
    %17 = arith.select %15, %16, %5 : vector<4x512xi1>, vector<4x512xf32>
    %cst_7 = arith.constant 1.000000e+00 : f32
    %18 = vector.broadcast %cst_7 : f32 to vector<4x512xf32>
    %19 = arith.addf %18, %5 : vector<4x512xf32>
    %20 = arith.divf %17, %19 : vector<4x512xf32>
    %cst_8 = arith.constant -5.000000e-01 : f32
    %21 = vector.broadcast %cst_8 : f32 to vector<4x512xf32>
    %22 = arith.mulf %1, %21 : vector<4x512xf32>
    %cst_9 = arith.constant 7.500000e-01 : f32
    %23 = vector.broadcast %cst_9 : f32 to vector<4x512xf32>
    %24 = arith.addf %23, %22 : vector<4x512xf32>
    %25 = arith.subf %1, %20 : vector<4x512xf32>
    %26 = math.absf %25 : vector<4x512xf32>
    %27 = math.sqrt %26 : vector<4x512xf32>
    %28 = arith.mulf %26, %27 : vector<4x512xf32>
    %29 = arith.mulf %13, %24 : vector<4x512xf32>
    %30 = arith.mulf %29, %28 : vector<4x512xf32>
    %c0_10 = arith.constant 0 : index
    %c0_11 = arith.constant 0 : index
    %31 = vector.load %arg3[%c0_10, %c0_11] : memref<4x512xf32, #tpu.memory_space<vmem>>, vector<4x512xf32>
    tpu.vector_store %arg3[%c0_10, %c0_11], %30 {strides = array<i32>} : memref<4x512xf32, #tpu.memory_space<vmem>>, vector<4x512xf32>,
    return
  }
  func.func @transform_0(%arg0: i32) -> (i32, i32) {
    %c0_i32 = arith.constant 0 : i32
    %c0_i32_0 = arith.constant 0 : i32
    return %arg0, %c0_i32 : i32, i32
  }
  func.func @transform_1(%arg0: i32) -> (i32, i32) {
    %c0_i32 = arith.constant 0 : i32
    %c0_i32_0 = arith.constant 0 : i32
    return %arg0, %c0_i32 : i32, i32
  }
  func.func @transform_2(%arg0: i32) -> (i32, i32) {
    %c0_i32 = arith.constant 0 : i32
    %c0_i32_0 = arith.constant 0 : i32
    return %arg0, %c0_i32 : i32, i32
  }
}

</mosaic_0001>

<llo_original>
// kernel: tpu_custom_call.1
$region0: #{tpu_custom_call.1}
  #allocation0 [shape = 'u32[]', space=smem, size = 0x4, offset = 0x4, fixed_abs, tag = 'smem constant byte address 0x4 - core index']
  #allocation1 [shape = 'u32[72,128]{1,0:T(1,128)}', space=vmem, size = 0x9000, scoped, tag = 'internal scratch']
  %s0 = inlined_call_operand.hbm [shape: f32[4,512], index: 0, kind: input, shape index: {}]
  %s1 = inlined_call_operand.hbm [shape: f32[4,512], index: 1, kind: input, shape index: {}]
  %s2 = inlined_call_operand.hbm [shape: f32[4,512], index: 2, kind: output, shape index: {}]
  %s3 = sld [smem:[#allocation0]]
  $region26: #{tpu_custom_call.1} parent=0
    _
  %s5 = ssub.s32 1, %s3
  %s6 = scalar_select 0, %s5, %s3
  $region1: #{tpu_custom_call.1} parent=0
    #allocation2 [shape = 'u8[8192]{0}', space=vmem, size = 0x2000, scoped, tag = 'input window, operand 0, single buffered']
    #allocation3 [shape = 's32[1]{0}', space=sflag, size = 0x4, scoped, tag = 'scoped memory for tpu_custom_call.1']
    #allocation4 [shape = 's32[1]{0}', space=sflag, size = 0x4, scoped, tag = 'scoped memory for tpu_custom_call.1']
    #allocation5 [shape = 'u8[8192]{0}', space=vmem, size = 0x2000, scoped, tag = 'input window, operand 1, single buffered']
    #allocation6 [shape = 's32[1]{0}', space=sflag, size = 0x4, scoped, tag = 'scoped memory for tpu_custom_call.1']
    #allocation7 [shape = 'u8[8192]{0}', space=vmem, size = 0x2000, scoped, tag = 'output window, operand 0, single buffered']
    %7 = vsyncpa [#allocation3], 0
    %8 = vsyncpa [#allocation6], 0
    %9 = vsyncpa [#allocation4], 0
    // Predicated region
    $region2: #{tpu_custom_call.1} parent=1 // pred_check
      _
    $region3: #{tpu_custom_call.1} parent=1 // pred_check_branch
      %11 = sbr.rel (0) target = $region5
    $region4: #{tpu_custom_call.1} parent=1 // pred_region
      %13 = vsyncadd [#allocation3], 0
      %s15 = sshll.u32 %s0, 4
      %s16 = int_to_ptr.hbm [resolvable:$true] %s15
      %s17 = sshll.u32 [#allocation2], 4
      %s18 = int_to_ptr.vmem [resolvable:$true] %s17
      %20 = dma.hbm_to_vmem [thread:$0]  %s16, 256, %s18, [#allocation3]
    $region5: #{tpu_custom_call.1} parent=1 // pred_fallthru
      _
    // Predicated region
    $region6: #{tpu_custom_call.1} parent=1 // pred_check
      _
    $region7: #{tpu_custom_call.1} parent=1 // pred_check_branch
      %22 = sbr.rel (0) target = $region9
    $region8: #{tpu_custom_call.1} parent=1 // pred_region
      %24 = vsyncadd [#allocation6], 0
      %s26 = sshll.u32 %s1, 4
      %s27 = int_to_ptr.hbm [resolvable:$true] %s26
      %s28 = sshll.u32 [#allocation5], 4
      %s29 = int_to_ptr.vmem [resolvable:$true] %s28
      %31 = dma.hbm_to_vmem [thread:$0]  %s27, 256, %s29, [#allocation6]
    $region9: #{tpu_custom_call.1} parent=1 // pred_fallthru
      _
    // Predicated region
    $region10: #{tpu_custom_call.1} parent=1 // pred_check
      _
    $region11: #{tpu_custom_call.1} parent=1 // pred_check_branch
      %33 = sbr.rel (0) target = $region13
    $region12: #{tpu_custom_call.1} parent=1 // pred_region
      %35 = dma.done [#allocation3], 256
    $region13: #{tpu_custom_call.1} parent=1 // pred_fallthru
      _
    // Predicated region
    $region14: #{tpu_custom_call.1} parent=1 // pred_check
      _
    $region15: #{tpu_custom_call.1} parent=1 // pred_check_branch
      %37 = sbr.rel (0) target = $region17
    $region16: #{tpu_custom_call.1} parent=1 // pred_region
      %39 = dma.done [#allocation6], 256
    $region17: #{tpu_custom_call.1} parent=1 // pred_fallthru
      _
    %v40 = vld [vmem:[#allocation2] sm:$0xff]
    %v41 = vld [vmem:[#allocation2 + $0x8] sm:$0xff]
    %v42 = vld [vmem:[#allocation5] sm:$0xff]
    %v43 = vld [vmem:[#allocation5 + $0x8] sm:$0xff]
    %v44 = vand.u32 2147483647, %v40
    %v45 = vand.u32 2147483647, %v41
    %v46 = vsub.f32 0.0, %v44
    %v47 = vsub.f32 0.0, %v45
    %v48 = vmul.f32 %v46, 1.442695
    %v49 = vpow.pop %v48
    %v50 = vmul.f32 %v47, 1.442695
    %v51 = vpow.pop %v50
    %v52 = vmax.f32 %v40, 0.0
    %v53 = vmax.f32 %v41, 0.0
    %v54 = vmul.f32 %v40, %v42
    %v55 = vmul.f32 %v41, %v43
    %v56 = vsub.f32 %v52, %v54
    %v57 = vsub.f32 %v53, %v55
    %v58 = vadd.f32 %v49, 1.0
    %v59 = vadd.f32 %v51, 1.0
    %v60 = vlog2.pop %v58
    %v61 = vmul.f32 %v60, 0.6931472
    %v62 = vlog2.pop %v59
    %v63 = vmul.f32 %v62, 0.6931472
    %v64 = vadd.f32 %v56, %v61
    %v65 = vadd.f32 %v57, %v63
    %vm66 = vcmp.ge.f32.partialorder %v40, 0.0
    %vm67 = vcmp.ge.f32.partialorder %v41, 0.0
    %v68 = vsel %vm66, 1.0, %v49
    %v69 = vsel %vm67, 1.0, %v51
    %v70 = vrcp.pop %v58
    %v71 = vmul.f32 %v58, %v70
    %v72 = vsub.f32 1.0, %v71
    %v73 = vmul.f32 %v70, %v72
    %v74 = vadd.f32 %v70, %v73
    %vm75 = vweird.f32 %v58
    %vm76 = vweird.f32 %v70
    %vm77 = vmor %vm75, %vm76
    %v78 = vsel %vm77, %v70, %v74
    %v79 = vand.u32 2147483647, %v58
    %vm80 = vcmp.eq.f32.partialorder %v79, 8.507059e+37
    %v81 = vand.u32 %v58, 2147483648
    %v82 = vor.u32 1.1754944e-38, %v81
    %v83 = vsel %vm80, %v82, %v78
    %v84 = vmul.f32 %v68, %v83
    %v85 = vrcp.pop %v59
    %v86 = vmul.f32 %v59, %v85
    %v87 = vsub.f32 1.0, %v86
    %v88 = vmul.f32 %v85, %v87
    %v89 = vadd.f32 %v85, %v88
    %vm90 = vweird.f32 %v59
    %vm91 = vweird.f32 %v85
    %vm92 = vmor %vm90, %vm91
    %v93 = vsel %vm92, %v85, %v89
    %v94 = vand.u32 2147483647, %v59
    %vm95 = vcmp.eq.f32.partialorder %v94, 8.507059e+37
    %v96 = vand.u32 %v59, 2147483648
    %v97 = vor.u32 1.1754944e-38, %v96
    %v98 = vsel %vm95, %v97, %v93
    %v99 = vmul.f32 %v69, %v98
    %v100 = vmul.f32 %v42, -0.5
    %v101 = vmul.f32 %v43, -0.5
    %v102 = vadd.f32 %v100, 0.75
    %v103 = vadd.f32 %v101, 0.75
    %v104 = vsub.f32 %v42, %v84
    %v105 = vsub.f32 %v43, %v99
    %v106 = vand.u32 2147483647, %v104
    %v107 = vand.u32 2147483647, %v105
    %v108 = vrsqrt.pop %v106
    %v109 = vmul.f32 %v108, %v106
    %v110 = vmul.f32 %v109, %v108
    %v111 = vmul.f32 0.5, %v110
    %v112 = vsub.f32 1.5, %v111
    %v113 = vmul.f32 %v108, %v112
    %v114 = vmul.f32 %v106, %v113
    %vm115 = vcmp.eq.f32.partialorder %v106, inf
    %v116 = vsel %vm115, %v106, %v114
    %vm117 = vcmp.eq.f32.partialorder %v106, 0.0
    %v118 = vand.u32 %v106, 2147483648
    %v119 = vsel %vm117, %v118, %v116
    %v120 = vrsqrt.pop %v107
    %v121 = vmul.f32 %v120, %v107
    %v122 = vmul.f32 %v121, %v120
    %v123 = vmul.f32 0.5, %v122
    %v124 = vsub.f32 1.5, %v123
    %v125 = vmul.f32 %v120, %v124
    %v126 = vmul.f32 %v107, %v125
    %vm127 = vcmp.eq.f32.partialorder %v107, inf
    %v128 = vsel %vm127, %v107, %v126
    %vm129 = vcmp.eq.f32.partialorder %v107, 0.0
    %v130 = vand.u32 %v107, 2147483648
    %v131 = vsel %vm129, %v130, %v128
    %v132 = vmul.f32 %v106, %v119
    %v133 = vmul.f32 %v107, %v131
    %v134 = vmul.f32 %v64, %v102
    %v135 = vmul.f32 %v65, %v103
    %v136 = vmul.f32 %v134, %v132
    %v137 = vmul.f32 %v135, %v133
    %138 = vst [vmem:[#allocation7] sm:$0xff] %v136
    %139 = vst [vmem:[#allocation7 + $0x8] sm:$0xff] %v137
    // Predicated region
    $region18: #{tpu_custom_call.1} parent=1 // pred_check
      _
    $region19: #{tpu_custom_call.1} parent=1 // pred_check_branch
      %141 = sbr.rel (0) target = $region21
    $region20: #{tpu_custom_call.1} parent=1 // pred_region
      %143 = vsyncadd [#allocation4], 0
      %s145 = sshll.u32 [#allocation7], 4
      %s146 = int_to_ptr.vmem [resolvable:$true] %s145
      %s147 = sshll.u32 %s2, 4
      %s148 = int_to_ptr.hbm [resolvable:$true] %s147
      %150 = dma.vmem_to_hbm [thread:$0]  %s146, 256, %s148, [#allocation4]
    $region21: #{tpu_custom_call.1} parent=1 // pred_fallthru
      _
    // Predicated region
    $region22: #{tpu_custom_call.1} parent=1 // pred_check
      _
    $region23: #{tpu_custom_call.1} parent=1 // pred_check_branch
      %152 = sbr.rel (0) target = $region25
    $region24: #{tpu_custom_call.1} parent=1 // pred_region
      %154 = dma.done [#allocation4], 256
    $region25: #{tpu_custom_call.1} parent=1 // pred_fallthru
      _
    %155 = vsyncpa [#allocation3], 1
    %156 = vsyncpa [#allocation6], 1
    %157 = vsyncpa [#allocation4], 1

</llo_original>
